<compile_context>
chip_gen: v7x
topology: tpu7x:2x2x1
jax: 0.10.0
libtpu: 0.0.40
codegen_flags: <defaults>
</compile_context>

<pallas_src>
import functools

import jax
import jax.numpy as jnp
from jax.experimental import pallas as pl
from jax.experimental.pallas import tpu as pltpu


# ----------------------------- kernels ------------------------------------ #

def _pe_add_kernel(x_ref, pe_ref, o_ref):
    # pe_ref is either the same shape as x_ref or has a leading-1 row dim
    # (broadcast over the batch rows).
    y = x_ref[...].astype(jnp.float32) + pe_ref[...].astype(jnp.float32)
    o_ref[...] = y.astype(o_ref.dtype)


def _pe_add_dropout_kernel(x_ref, pe_ref, bits_ref, o_ref, *,
                           keep_threshold, inv_keep):
    y = x_ref[...].astype(jnp.float32) + pe_ref[...].astype(jnp.float32)
    keep = bits_ref[...] >= jnp.uint32(keep_threshold)      # P(keep) = 1 - p
    y = jnp.where(keep, y * jnp.float32(inv_keep), jnp.float32(0.0))
    o_ref[...] = y.astype(o_ref.dtype)


# --------------------------- wrapper / specs ------------------------------- #

_VMEM_BUDGET_BYTES = 12 * 1024 * 1024   # stays under v5e's 16 MiB scoped default


def make_positional_encoding(d_model, max_len=500, dtype=jnp.float32):
    """Deterministic buffer construction, mirrors PositionalEncoding.__init__."""
    position = jnp.arange(max_len, dtype=jnp.float32)[:, None]            # (L, 1)
    div_term = jnp.exp(
        jnp.arange(0, d_model, 2, dtype=jnp.float32)
        * (-jnp.log(jnp.float32(10000.0)) / d_model))                     # (D/2,)
    pe = jnp.zeros((max_len, d_model), dtype=jnp.float32)
    pe = pe.at[:, 0::2].set(jnp.sin(position * div_term))
    pe = pe.at[:, 1::2].set(jnp.cos(position * div_term))
    return pe.astype(dtype)


def positional_encoding_forward(x, pe, *, p_dropout=0.1, training=False,
                                rng_key=None):
    """x: (B, S, D); pe: (max_len, D). Returns dropout(x + pe[:S])."""
    B, S, D = x.shape
    pe_s = pe[:S].astype(jnp.float32)
    use_dropout = bool(training) and float(p_dropout) > 0.0

    if use_dropout:
        if rng_key is None:
            rng_key = jax.random.PRNGKey(0)
        bits = jax.random.bits(rng_key, (B, S, D), dtype=jnp.uint32)
        keep_threshold = min(int(round(float(p_dropout) * 2.0 ** 32)), 2 ** 32 - 1)
        kernel = functools.partial(
            _pe_add_dropout_kernel,
            keep_threshold=keep_threshold,
            inv_keep=1.0 / (1.0 - float(p_dropout)),
        )
    else:
        bits = None
        kernel = _pe_add_kernel

    # Pessimistic f32 accounting of double-buffered operands per grid step:
    # 2*x + 2*out + 2*pe (+ 2*bits in training).
    n_bufs = 8 if use_dropout else 6

    if D % 128 == 0:
        # Already lane-dense: tile the sequence dim, keep D whole.
        ts = _VMEM_BUDGET_BYTES // (n_bufs * D * 4)
        ts = min(S, max(8, (ts // 8) * 8))
        grid = (pl.cdiv(S, ts), B)   # batch innermost -> pe tile stays resident
        x_spec = pl.BlockSpec((None, ts, D), lambda s, b: (b, s, 0))
        bits_spec = pl.BlockSpec((None, ts, D), lambda s, b: (b, s, 0))
        pe_spec = pl.BlockSpec((ts, D), lambda s, b: (s, 0))
        out_spec = pl.BlockSpec((None, ts, D), lambda s, b: (b, s, 0))
        in_specs = [x_spec, pe_spec] + ([bits_spec] if use_dropout else [])
        operands = (x, pe_s) + ((bits,) if use_dropout else ())
        return pl.pallas_call(
            kernel,
            out_shape=jax.ShapeDtypeStruct((B, S, D), x.dtype),
            grid=grid,
            in_specs=in_specs,
            out_specs=out_spec,
            compiler_params=pltpu.CompilerParams(
                dimension_semantics=("parallel", "parallel")),
        )(*operands)

    # D not a multiple of 128 (e.g. D=32): collapse (S, D) into one lane-dense
    # axis so stores are full-width, and tile that axis instead.
    n = S * D
    x2 = x.reshape(B, n)
    pe2 = pe_s.reshape(1, n)
    tn = _VMEM_BUDGET_BYTES // (n_bufs * B * 4)
    tn = max(128, (tn // 128) * 128)
    if n % 128 != 0 or n <= tn:
        tn = n                       # full axis is always a legal block extent
    grid = (pl.cdiv(n, tn),)
    x_spec = pl.BlockSpec((B, tn), lambda i: (0, i))
    bits_spec = pl.BlockSpec((B, tn), lambda i: (0, i))
    pe_spec = pl.BlockSpec((1, tn), lambda i: (0, i))
    out_spec = pl.BlockSpec((B, tn), lambda i: (0, i))
    in_specs = [x_spec, pe_spec] + ([bits_spec] if use_dropout else [])
    operands = (x2, pe2) + ((bits.reshape(B, n),) if use_dropout else ())
    y = pl.pallas_call(
        kernel,
        out_shape=jax.ShapeDtypeStruct((B, n), x.dtype),
        grid=grid,
        in_specs=in_specs,
        out_specs=out_spec,
        compiler_params=pltpu.CompilerParams(dimension_semantics=("parallel",)),
    )(*operands)
    return y.reshape(B, S, D)


# --------------------------------- demo ------------------------------------ #

if __name__ == "__main__":
    key = jax.random.PRNGKey(0)
    kx, kx2, kdrop = jax.random.split(key, 3)

    # Small shapes consistent with the module: batch=2, seq=8, d_model=32.
    B, S, D = 2, 8, 32
    x = jax.random.normal(kx, (B, S, D), dtype=jnp.float32)
    pe = make_positional_encoding(d_model=D, max_len=500)

    # Eval mode (dropout = identity): must match the reference exactly.
    y_eval = jax.block_until_ready(
        positional_encoding_forward(x, pe, p_dropout=0.1, training=False))
    y_ref = x + pe[None, :S, :]
    assert y_eval.shape == x.shape and y_eval.dtype == x.dtype
    assert jnp.allclose(y_eval, y_ref, atol=1e-6, rtol=1e-6), "eval mismatch"

    # Lane-dense path (D multiple of 128), exercised at a small size too.
    B2, S2, D2 = 2, 16, 128
    x128 = jax.random.normal(kx2, (B2, S2, D2), dtype=jnp.float32)
    pe128 = make_positional_encoding(d_model=D2, max_len=500)
    y128 = jax.block_until_ready(
        positional_encoding_forward(x128, pe128, p_dropout=0.1, training=False))
    assert jnp.allclose(y128, x128 + pe128[None, :S2, :], atol=1e-6, rtol=1e-6)

    # Training mode: every output element is either dropped (exact 0) or the
    # reference value scaled by 1/(1-p).
    p = 0.1
    y_train = jax.block_until_ready(
        positional_encoding_forward(x, pe, p_dropout=p, training=True,
                                    rng_key=kdrop))
    scaled = y_ref / (1.0 - p)
    ok = (jnp.isclose(y_train, 0.0, atol=1e-6)
          | jnp.isclose(y_train, scaled, rtol=1e-5, atol=1e-5))
    assert bool(jnp.all(ok)), "training-mode dropout output malformed"

    print("KERNEL_OK")
</pallas_src>

<mosaic_0001>
module attributes {stable_mosaic.version = 11 : i64} {
  func.func @_pe_add_kernel(%arg0: i32, %arg1: memref<2x256xf32, #tpu.memory_space<vmem>>, %arg2: memref<1x256xf32, #tpu.memory_space<vmem>>, %arg3: memref<2x256xf32, #tpu.memory_space<vmem>>) attributes {dimension_semantics = [#tpu.dimension_semantics<parallel>], iteration_bounds = array<i64: 1>, scalar_prefetch = 0 : i64, scratch_operands = 0 : i64, tpu.core_type = #tpu.core_type<tc>, window_params = [{transform_indices = @transform_0, window_bounds = array<i64: 2, 256>}, {transform_indices = @transform_1, window_bounds = array<i64: 1, 256>}, {transform_indices = @transform_2, window_bounds = array<i64: 2, 256>}]} {
    %c0 = arith.constant 0 : index
    %c0_0 = arith.constant 0 : index
    %0 = vector.load %arg1[%c0, %c0_0] : memref<2x256xf32, #tpu.memory_space<vmem>>, vector<2x256xf32>
    %c0_1 = arith.constant 0 : index
    %c0_2 = arith.constant 0 : index
    %1 = vector.load %arg2[%c0_1, %c0_2] : memref<1x256xf32, #tpu.memory_space<vmem>>, vector<1x256xf32>
    %2 = vector.broadcast %1 : vector<1x256xf32> to vector<2x256xf32>
    %3 = arith.addf %0, %2 : vector<2x256xf32>
    %c0_3 = arith.constant 0 : index
    %c0_4 = arith.constant 0 : index
    %4 = vector.load %arg3[%c0_3, %c0_4] : memref<2x256xf32, #tpu.memory_space<vmem>>, vector<2x256xf32>
    tpu.vector_store %arg3[%c0_3, %c0_4], %3 {strides = array<i32>} : memref<2x256xf32, #tpu.memory_space<vmem>>, vector<2x256xf32>,
    return
  }
  func.func @transform_0(%arg0: i32) -> (i32, i32) {
    %c0_i32 = arith.constant 0 : i32
    %c0_i32_0 = arith.constant 0 : i32
    return %c0_i32, %arg0 : i32, i32
  }
  func.func @transform_1(%arg0: i32) -> (i32, i32) {
    %c0_i32 = arith.constant 0 : i32
    %c0_i32_0 = arith.constant 0 : i32
    return %c0_i32, %arg0 : i32, i32
  }
  func.func @transform_2(%arg0: i32) -> (i32, i32) {
    %c0_i32 = arith.constant 0 : i32
    %c0_i32_0 = arith.constant 0 : i32
    return %c0_i32, %arg0 : i32, i32
  }
}

</mosaic_0001>

<llo_original>
// kernel: tpu_custom_call.1
$region0: #{tpu_custom_call.1}
  #allocation0 [shape = 'u32[]', space=smem, size = 0x4, offset = 0x4, fixed_abs, tag = 'smem constant byte address 0x4 - core index']
  #allocation1 [shape = 'u32[144,128]{1,0:T(1,128)}', space=vmem, size = 0x12000, scoped, tag = 'internal scratch']
  %s0 = inlined_call_operand.hbm [shape: f32[2,256], index: 0, kind: input, shape index: {}]
  %s1 = inlined_call_operand.vmem [shape: f32[1,256], index: 1, kind: input, shape index: {}]
  %s2 = inlined_call_operand.hbm [shape: f32[2,256], index: 2, kind: output, shape index: {}]
  %s3 = sld [smem:[#allocation0]]
  $region22: #{tpu_custom_call.1} parent=0
    _
  %s5 = ssub.s32 1, %s3
  %s6 = scalar_select 0, %s5, %s3
  $region1: #{tpu_custom_call.1} parent=0
    #allocation2 [shape = 'u8[2048]{0}', space=vmem, size = 0x800, scoped, tag = 'input window, operand 0, single buffered']
    #allocation3 [shape = 's32[1]{0}', space=sflag, size = 0x4, scoped, tag = 'scoped memory for tpu_custom_call.1']
    #allocation4 [shape = 's32[1]{0}', space=sflag, size = 0x4, scoped, tag = 'scoped memory for tpu_custom_call.1']
    #allocation5 [shape = 'u8[2048]{0}', space=vmem, size = 0x800, scoped, tag = 'output window, operand 0, single buffered']
    %7 = vsyncpa [#allocation3], 0
    %8 = vsyncpa [#allocation4], 0
    // Predicated region
    $region2: #{tpu_custom_call.1} parent=1 // pred_check
      _
    $region3: #{tpu_custom_call.1} parent=1 // pred_check_branch
      %10 = sbr.rel (0) target = $region5
    $region4: #{tpu_custom_call.1} parent=1 // pred_region
      %s12 = ssub.s32 64, 64
      %13 = vsyncadd [#allocation3], %s12
      %s15 = sshll.u32 [#allocation2], 4
      %s16 = int_to_ptr.vmem [resolvable:$true] %s15
      %18 = dma.hbm_to_vmem [thread:$0]  %s0, 64, %s16, [#allocation3]
    $region5: #{tpu_custom_call.1} parent=1 // pred_fallthru
      _
    // Predicated region
    $region6: #{tpu_custom_call.1} parent=1 // pred_check
      _
    $region7: #{tpu_custom_call.1} parent=1 // pred_check_branch
      %20 = sbr.rel (0) target = $region9
    $region8: #{tpu_custom_call.1} parent=1 // pred_region
      _
    $region9: #{tpu_custom_call.1} parent=1 // pred_fallthru
      _
    // Predicated region
    $region10: #{tpu_custom_call.1} parent=1 // pred_check
      _
    $region11: #{tpu_custom_call.1} parent=1 // pred_check_branch
      %22 = sbr.rel (0) target = $region13
    $region12: #{tpu_custom_call.1} parent=1 // pred_region
      %23 = dma.done [#allocation3], 64
    $region13: #{tpu_custom_call.1} parent=1 // pred_fallthru
      _
    %v24 = vld [vmem:[#allocation2] sm:$0xf]
    %v25 = vld [vmem:[%s1] sm:$0x3]
    %v27 = vlaneseq
    %v28 = vshrl.u32 %v27, 7
    %v29 = vsub.s32 0, %v28
    %v30 = vrot.slane %v25, %v29
    %v31 = vlaneseq
    %v32 = vshrl.u32 %v31, 7
    %v33 = vsub.s32 1, %v32
    %v34 = vrot.slane %v25, %v33
    %v35 = vcombine.low %v30, %v34
    %v37 = vunpack.c.l.s4 1983009808
    %v38 = vunpack.c.0.s8 %v37
    %v39 = vlaneseq
    %v40 = vshrl.u32 %v39, 7
    %v41 = vsub.s32 %v38, %v40
    %v42 = vrot.slane %v35, %v41
    %v44 = vadd.f32 %v24, %v42
    %45 = vst [vmem:[#allocation5] sm:$0xf] %v44
    // Predicated region
    $region14: #{tpu_custom_call.1} parent=1 // pred_check
      _
    $region15: #{tpu_custom_call.1} parent=1 // pred_check_branch
      %47 = sbr.rel (0) target = $region17
    $region16: #{tpu_custom_call.1} parent=1 // pred_region
      %s49 = ssub.s32 64, 64
      %50 = vsyncadd [#allocation4], %s49
      %s52 = sshll.u32 [#allocation5], 4
      %s53 = int_to_ptr.vmem [resolvable:$true] %s52
      %55 = dma.vmem_to_hbm [thread:$0]  %s53, 64, %s2, [#allocation4]
    $region17: #{tpu_custom_call.1} parent=1 // pred_fallthru
      _
    // Predicated region
    $region18: #{tpu_custom_call.1} parent=1 // pred_check
      _
    $region19: #{tpu_custom_call.1} parent=1 // pred_check_branch
      %57 = sbr.rel (0) target = $region21
    $region20: #{tpu_custom_call.1} parent=1 // pred_region
      %58 = dma.done [#allocation4], 64
    $region21: #{tpu_custom_call.1} parent=1 // pred_fallthru
      _
    %59 = vsyncpa [#allocation3], 1
    %60 = vsyncpa [#allocation4], 1

</llo_original>
